<compile_context>
chip_gen: v5e
topology: v5e:2x2
jax: 0.10.0
libtpu: 0.0.40
codegen_flags: <defaults>
</compile_context>

<pallas_src>
import jax
import jax.numpy as jnp
from jax import lax
from jax.experimental import pallas as pl
from jax.experimental.pallas import tpu as pltpu


def _round_up(x, m):
    return ((x + m - 1) // m) * m


def _cbow_train_kernel(ctx_ref, emb_ref, wt_ref, bias_ref, out_ref, acc_ref):
    """One grid step = one (batch tile, vocab tile) pair.

    ctx_ref : VMEM (TB, C)        int32  -- context ids for this batch tile
    emb_ref : VMEM (VE_pad, E_pad) bf16  -- full (padded) embedding table, resident
    wt_ref  : VMEM (E_pad, TV)     bf16  -- pre-transposed Linear weight tile
    bias_ref: VMEM (1, TV)         f32
    out_ref : VMEM (TB, TV)        f32
    acc_ref : VMEM (TB, E_pad)     f32 scratch (embeds_sum, reused across vocab tiles)
    """
    j = pl.program_id(1)

    # ---- bag-of-words sum, computed once per batch tile (innermost j == 0) ----
    @pl.when(j == 0)
    def _():
        TB, C = ctx_ref.shape
        VE = emb_ref.shape[0]
        ctx = ctx_ref[...]                                       # (TB, C) int32
        iota_v = lax.broadcasted_iota(jnp.int32, (TB, VE), 1)
        # Two partial accumulators break the serial add dependence chain.
        cnt0 = jnp.zeros((TB, VE), jnp.float32)
        cnt1 = jnp.zeros((TB, VE), jnp.float32)
        for c in range(C):                                       # C is small & static
            hit = (iota_v == ctx[:, c:c + 1]).astype(jnp.float32)
            if c % 2 == 0:
                cnt0 = cnt0 + hit
            else:
                cnt1 = cnt1 + hit
        counts = (cnt0 + cnt1).astype(jnp.bfloat16)              # small ints: exact in bf16
        # embeds_sum = counts @ embedding table  (MXU, f32 accumulation)
        acc_ref[...] = jnp.dot(counts, emb_ref[...],
                               preferred_element_type=jnp.float32)

    # ---- Linear tile: (TB, E) @ (E, TV) on the MXU, then bias add ----
    logits = jnp.dot(acc_ref[...].astype(jnp.bfloat16), wt_ref[...],
                     preferred_element_type=jnp.float32)
    out_ref[...] = logits + bias_ref[...]


def cbow_forward(context, embed_w, linear_w, linear_b, training=True,
                 tb=256, tv=512):
    """context: [B, C] int; embed_w: [V, E]; linear_w: [V, E]; linear_b: [V].

    tb: batch tile target (v6e/v7x ~256, v5e prefers 128).
    tv: vocab tile target for the linear layer (multiple of 128).
    """
    if not training:
        # Eval branch of the PyTorch module is a pure embedding gather.
        return jnp.take(embed_w, context, axis=0)

    B, C = context.shape
    V, E = embed_w.shape

    # ---------------- tile sizes ----------------
    TB = _round_up(min(max(tb, 8), 512), 8)
    B8 = _round_up(B, 8)
    if TB >= B8:
        # Whole batch would be one tile: split into (at least) two tiles when
        # possible so v7x's 2 TensorCores both get work on the "parallel" axis.
        TB = B8 if B8 <= 8 else _round_up(B8 // 2, 8)
    B_pad = _round_up(B, TB)

    E_pad = _round_up(E, 128)
    VE_pad = _round_up(V, 128)                       # embedding-table vocab padding
    TV = _round_up(min(max(tv, 128), _round_up(V, 128)), 128)
    V_pad = _round_up(V, TV)                         # output / linear-weight vocab padding

    nb, nv = B_pad // TB, V_pad // TV

    # ---------------- operand prep (one-time, in HBM) ----------------
    ctx = context.astype(jnp.int32)
    if B_pad != B:
        # padded rows gather id 0; their logits are sliced off after the call
        ctx = jnp.pad(ctx, ((0, B_pad - B), (0, 0)))

    # bf16 weights halve HBM->VMEM bytes / VMEM residency; accumulate in f32.
    emb_bf = jnp.zeros((VE_pad, E_pad), jnp.bfloat16).at[:V, :E].set(
        embed_w.astype(jnp.bfloat16))
    # Pre-transposed (E, V): canonical (M,K)x(K,N) MXU orientation, one-time cost.
    wt_bf = jnp.zeros((E_pad, V_pad), jnp.bfloat16).at[:E, :V].set(
        linear_w.astype(jnp.bfloat16).T)
    bias2 = jnp.zeros((1, V_pad), jnp.float32).at[0, :V].set(
        linear_b.astype(jnp.float32))

    # ---------------- VMEM budget ----------------
    ctx_b = TB * C * 4
    emb_b = VE_pad * E_pad * 2
    wt_b = E_pad * TV * 2
    bias_b = TV * 4
    out_b = TB * TV * 4
    acc_b = TB * E_pad * 4
    needed = 2 * (ctx_b + emb_b + wt_b + bias_b + out_b) + acc_b + (4 << 20)
    try:
        cap = int(pltpu.get_tpu_info().vmem_capacity_bytes)   # 128 MiB v5e/v6e, 64 MiB v7x
    except Exception:
        cap = 128 << 20
    vmem_limit = int(min(max(needed, 32 << 20), int(0.85 * cap)))

    # TODO(synk): for vocab beyond a few thousand, keep the embedding table in
    # HBM (memory_space=pl.ANY) and DMA-gather the C rows per batch row into a
    # double-buffered staging scratch instead of the in-kernel bag-count
    # compare, and mark the resident embedding block pipeline_mode=pl.Buffered(1)
    # to drop its double-buffer (matters on v7x's 64 MiB VMEM).
    out = pl.pallas_call(
        _cbow_train_kernel,
        out_shape=jax.ShapeDtypeStruct((B_pad, V_pad), jnp.float32),
        grid=(nb, nv),
        in_specs=[
            pl.BlockSpec((TB, C), lambda i, j: (i, 0)),            # context ids (per-tile VMEM)
            pl.BlockSpec((VE_pad, E_pad), lambda i, j: (0, 0)),    # embedding table (resident)
            pl.BlockSpec((E_pad, TV), lambda i, j: (0, j)),        # linear weight (streams over V)
            pl.BlockSpec((1, TV), lambda i, j: (0, j)),            # bias tile
        ],
        out_specs=pl.BlockSpec((TB, TV), lambda i, j: (i, j)),
        scratch_shapes=[pltpu.VMEM((TB, E_pad), jnp.float32)],
        compiler_params=pltpu.CompilerParams(
            dimension_semantics=("parallel", "arbitrary"),
            vmem_limit_bytes=vmem_limit),
    )(ctx, emb_bf, wt_bf, bias2)

    return out[:B, :V]


if __name__ == "__main__":
    def ref_bf16(context, embed_w, linear_w, linear_b):
        # Mirrors the kernel's bf16 weight cast (tight tolerance).
        emb_bf = embed_w.astype(jnp.bfloat16)
        w_bf = linear_w.astype(jnp.bfloat16)
        sums = jnp.take(emb_bf, context, axis=0).astype(jnp.float32).sum(axis=1)
        return lax.dot_general(sums.astype(jnp.bfloat16), w_bf,
                               (((1,), (1,)), ((), ())),
                               preferred_element_type=jnp.float32) + linear_b

    # ---- config 1: module's toy sizes ----
    vocab_size, embed_size, B, C = 256, 128, 4, 8
    k1, k2, k3, k4 = jax.random.split(jax.random.PRNGKey(0), 4)
    embed_w = jax.random.normal(k1, (vocab_size, embed_size), dtype=jnp.float32)
    bound = 1.0 / (embed_size ** 0.5)
    linear_w = jax.random.uniform(k2, (vocab_size, embed_size),
                                  minval=-bound, maxval=bound, dtype=jnp.float32)
    linear_b = jax.random.uniform(k3, (vocab_size,),
                                  minval=-bound, maxval=bound, dtype=jnp.float32)
    context = jax.random.randint(k4, (B, C), 0, vocab_size, dtype=jnp.int32)

    out = jax.block_until_ready(
        cbow_forward(context, embed_w, linear_w, linear_b, training=True))
    assert out.shape == (B, vocab_size)
    assert jnp.allclose(out, ref_bf16(context, embed_w, linear_w, linear_b),
                        atol=2e-2, rtol=2e-2), "mismatch vs bf16 ref (cfg1)"
    ref_f32 = jnp.take(embed_w, context, axis=0).sum(axis=1) @ linear_w.T + linear_b
    assert jnp.allclose(out, ref_f32, atol=2e-1, rtol=5e-2), "mismatch vs f32 ref (cfg1)"

    # ---- config 2: ragged sizes exercise batch/vocab/embed padding + 2-tile grid ----
    vocab_size2, embed_size2, B2, C2 = 300, 96, 40, 5
    k1, k2, k3, k4 = jax.random.split(jax.random.PRNGKey(1), 4)
    embed_w2 = jax.random.normal(k1, (vocab_size2, embed_size2), dtype=jnp.float32)
    bound2 = 1.0 / (embed_size2 ** 0.5)
    linear_w2 = jax.random.uniform(k2, (vocab_size2, embed_size2),
                                   minval=-bound2, maxval=bound2, dtype=jnp.float32)
    linear_b2 = jax.random.uniform(k3, (vocab_size2,),
                                   minval=-bound2, maxval=bound2, dtype=jnp.float32)
    context2 = jax.random.randint(k4, (B2, C2), 0, vocab_size2, dtype=jnp.int32)

    out2 = jax.block_until_ready(
        cbow_forward(context2, embed_w2, linear_w2, linear_b2, training=True))
    assert out2.shape == (B2, vocab_size2)
    assert jnp.allclose(out2, ref_bf16(context2, embed_w2, linear_w2, linear_b2),
                        atol=2e-2, rtol=2e-2), "mismatch vs bf16 ref (cfg2)"

    # ---- eval mode: pure embedding gather ----
    emb_out = cbow_forward(context, embed_w, linear_w, linear_b, training=False)
    assert jnp.allclose(emb_out, jnp.take(embed_w, context, axis=0))

    print("KERNEL_OK")
</pallas_src>

<mosaic_0001>
module attributes {stable_mosaic.version = 11 : i64} {
  func.func @_cbow_train_kernel(%arg0: i32, %arg1: i32, %arg2: memref<8x8xi32, #tpu.memory_space<vmem>>, %arg3: memref<256x128xbf16, #tpu.memory_space<vmem>>, %arg4: memref<128x256xbf16, #tpu.memory_space<vmem>>, %arg5: memref<1x256xf32, #tpu.memory_space<vmem>>, %arg6: memref<8x256xf32, #tpu.memory_space<vmem>>, %arg7: memref<8x128xf32, #tpu.memory_space<vmem>>) attributes {dimension_semantics = [#tpu.dimension_semantics<parallel>, #tpu.dimension_semantics<arbitrary>], iteration_bounds = array<i64: 1, 1>, scalar_prefetch = 0 : i64, scratch_operands = 1 : i64, tpu.core_type = #tpu.core_type<tc>, window_params = [{transform_indices = @transform_0, window_bounds = array<i64: 8, 8>}, {pipeline_mode = #tpu.pipeline_mode<synchronous>, transform_indices = @transform_1, window_bounds = array<i64: 256, 128>}, {transform_indices = @transform_2, window_bounds = array<i64: 128, 256>}, {transform_indices = @transform_3, window_bounds = array<i64: 1, 256>}, {transform_indices = @transform_4, window_bounds = array<i64: 8, 256>}]} {
    %c0_i32 = arith.constant 0 : i32
    %0 = arith.cmpi eq, %arg1, %c0_i32 : i32
    %1 = arith.extui %0 : i1 to i32
    %c0_i32_0 = arith.constant 0 : i32
    %2 = arith.cmpi ne, %1, %c0_i32_0 : i32
    scf.if %2 {
      %c0_8 = arith.constant 0 : index
      %c0_9 = arith.constant 0 : index
      %11 = vector.load %arg2[%c0_8, %c0_9] : memref<8x8xi32, #tpu.memory_space<vmem>>, vector<8x8xi32>
      %12 = tpu.iota {dimensions = array<i32: 1>} : vector<8x256xi32>
      %cst_10 = arith.constant 0.000000e+00 : f32
      %13 = vector.broadcast %cst_10 : f32 to vector<8x256xf32>
      %cst_11 = arith.constant 0.000000e+00 : f32
      %14 = vector.broadcast %cst_11 : f32 to vector<8x256xf32>
      %15 = vector.extract_strided_slice %11 {offsets = [0, 0], sizes = [8, 1], strides = [1, 1]} : vector<8x8xi32> to vector<8x1xi32>
      %16 = vector.broadcast %15 : vector<8x1xi32> to vector<8x256xi32>
      %17 = arith.cmpi eq, %12, %16 : vector<8x256xi32>
      %18 = arith.extui %17 : vector<8x256xi1> to vector<8x256xi32>
      %19 = arith.sitofp %18 : vector<8x256xi32> to vector<8x256xf32>
      %20 = arith.addf %13, %19 : vector<8x256xf32>
      %21 = vector.extract_strided_slice %11 {offsets = [0, 1], sizes = [8, 1], strides = [1, 1]} : vector<8x8xi32> to vector<8x1xi32>
      %22 = vector.broadcast %21 : vector<8x1xi32> to vector<8x256xi32>
      %23 = arith.cmpi eq, %12, %22 : vector<8x256xi32>
      %24 = arith.extui %23 : vector<8x256xi1> to vector<8x256xi32>
      %25 = arith.sitofp %24 : vector<8x256xi32> to vector<8x256xf32>
      %26 = arith.addf %14, %25 : vector<8x256xf32>
      %27 = vector.extract_strided_slice %11 {offsets = [0, 2], sizes = [8, 1], strides = [1, 1]} : vector<8x8xi32> to vector<8x1xi32>
      %28 = vector.broadcast %27 : vector<8x1xi32> to vector<8x256xi32>
      %29 = arith.cmpi eq, %12, %28 : vector<8x256xi32>
      %30 = arith.extui %29 : vector<8x256xi1> to vector<8x256xi32>
      %31 = arith.sitofp %30 : vector<8x256xi32> to vector<8x256xf32>
      %32 = arith.addf %20, %31 : vector<8x256xf32>
      %33 = vector.extract_strided_slice %11 {offsets = [0, 3], sizes = [8, 1], strides = [1, 1]} : vector<8x8xi32> to vector<8x1xi32>
      %34 = vector.broadcast %33 : vector<8x1xi32> to vector<8x256xi32>
      %35 = arith.cmpi eq, %12, %34 : vector<8x256xi32>
      %36 = arith.extui %35 : vector<8x256xi1> to vector<8x256xi32>
      %37 = arith.sitofp %36 : vector<8x256xi32> to vector<8x256xf32>
      %38 = arith.addf %26, %37 : vector<8x256xf32>
      %39 = vector.extract_strided_slice %11 {offsets = [0, 4], sizes = [8, 1], strides = [1, 1]} : vector<8x8xi32> to vector<8x1xi32>
      %40 = vector.broadcast %39 : vector<8x1xi32> to vector<8x256xi32>
      %41 = arith.cmpi eq, %12, %40 : vector<8x256xi32>
      %42 = arith.extui %41 : vector<8x256xi1> to vector<8x256xi32>
      %43 = arith.sitofp %42 : vector<8x256xi32> to vector<8x256xf32>
      %44 = arith.addf %32, %43 : vector<8x256xf32>
      %45 = vector.extract_strided_slice %11 {offsets = [0, 5], sizes = [8, 1], strides = [1, 1]} : vector<8x8xi32> to vector<8x1xi32>
      %46 = vector.broadcast %45 : vector<8x1xi32> to vector<8x256xi32>
      %47 = arith.cmpi eq, %12, %46 : vector<8x256xi32>
      %48 = arith.extui %47 : vector<8x256xi1> to vector<8x256xi32>
      %49 = arith.sitofp %48 : vector<8x256xi32> to vector<8x256xf32>
      %50 = arith.addf %38, %49 : vector<8x256xf32>
      %51 = vector.extract_strided_slice %11 {offsets = [0, 6], sizes = [8, 1], strides = [1, 1]} : vector<8x8xi32> to vector<8x1xi32>
      %52 = vector.broadcast %51 : vector<8x1xi32> to vector<8x256xi32>
      %53 = arith.cmpi eq, %12, %52 : vector<8x256xi32>
      %54 = arith.extui %53 : vector<8x256xi1> to vector<8x256xi32>
      %55 = arith.sitofp %54 : vector<8x256xi32> to vector<8x256xf32>
      %56 = arith.addf %44, %55 : vector<8x256xf32>
      %57 = vector.extract_strided_slice %11 {offsets = [0, 7], sizes = [8, 1], strides = [1, 1]} : vector<8x8xi32> to vector<8x1xi32>
      %58 = vector.broadcast %57 : vector<8x1xi32> to vector<8x256xi32>
      %59 = arith.cmpi eq, %12, %58 : vector<8x256xi32>
      %60 = arith.extui %59 : vector<8x256xi1> to vector<8x256xi32>
      %61 = arith.sitofp %60 : vector<8x256xi32> to vector<8x256xf32>
      %62 = arith.addf %50, %61 : vector<8x256xf32>
      %63 = arith.addf %56, %62 : vector<8x256xf32>
      %64 = arith.truncf %63 : vector<8x256xf32> to vector<8x256xbf16>
      %c0_12 = arith.constant 0 : index
      %c0_13 = arith.constant 0 : index
      %65 = vector.load %arg3[%c0_12, %c0_13] : memref<256x128xbf16, #tpu.memory_space<vmem>>, vector<256x128xbf16>
      %cst_14 = arith.constant dense<0.000000e+00> : vector<8x128xf32>
      %66 = tpu.matmul %64, %65, %cst_14 {dimension_numbers = #tpu.dot_dimension_numbers<[1], [0], [0], [1], [0, 0, 1, 1], [], []>} : vector<8x256xbf16>, vector<256x128xbf16>, vector<8x128xf32> -> vector<8x128xf32>
      %c0_15 = arith.constant 0 : index
      %c0_16 = arith.constant 0 : index
      %67 = vector.load %arg7[%c0_15, %c0_16] : memref<8x128xf32, #tpu.memory_space<vmem>>, vector<8x128xf32>
      tpu.vector_store %arg7[%c0_15, %c0_16], %66 {strides = array<i32>} : memref<8x128xf32, #tpu.memory_space<vmem>>, vector<8x128xf32>,
    } else {
    }
    %c0 = arith.constant 0 : index
    %c0_1 = arith.constant 0 : index
    %3 = vector.load %arg7[%c0, %c0_1] : memref<8x128xf32, #tpu.memory_space<vmem>>, vector<8x128xf32>
    %4 = arith.truncf %3 : vector<8x128xf32> to vector<8x128xbf16>
    %c0_2 = arith.constant 0 : index
    %c0_3 = arith.constant 0 : index
    %5 = vector.load %arg4[%c0_2, %c0_3] : memref<128x256xbf16, #tpu.memory_space<vmem>>, vector<128x256xbf16>
    %cst = arith.constant dense<0.000000e+00> : vector<8x256xf32>
    %6 = tpu.matmul %4, %5, %cst {dimension_numbers = #tpu.dot_dimension_numbers<[1], [0], [0], [1], [0, 0, 1, 1], [], []>} : vector<8x128xbf16>, vector<128x256xbf16>, vector<8x256xf32> -> vector<8x256xf32>
    %c0_4 = arith.constant 0 : index
    %c0_5 = arith.constant 0 : index
    %7 = vector.load %arg5[%c0_4, %c0_5] : memref<1x256xf32, #tpu.memory_space<vmem>>, vector<1x256xf32>
    %8 = vector.broadcast %7 : vector<1x256xf32> to vector<8x256xf32>
    %9 = arith.addf %6, %8 : vector<8x256xf32>
    %c0_6 = arith.constant 0 : index
    %c0_7 = arith.constant 0 : index
    %10 = vector.load %arg6[%c0_6, %c0_7] : memref<8x256xf32, #tpu.memory_space<vmem>>, vector<8x256xf32>
    tpu.vector_store %arg6[%c0_6, %c0_7], %9 {strides = array<i32>} : memref<8x256xf32, #tpu.memory_space<vmem>>, vector<8x256xf32>,
    return
  }
  func.func @transform_0(%arg0: i32, %arg1: i32) -> (i32, i32) {
    %c0_i32 = arith.constant 0 : i32
    %c0_i32_0 = arith.constant 0 : i32
    return %arg0, %c0_i32 : i32, i32
  }
  func.func @transform_1(%arg0: i32, %arg1: i32) -> (i32, i32) {
    %c0_i32 = arith.constant 0 : i32
    %c0_i32_0 = arith.constant 0 : i32
    %c0_i32_1 = arith.constant 0 : i32
    return %c0_i32, %c0_i32_0 : i32, i32
  }
  func.func @transform_2(%arg0: i32, %arg1: i32) -> (i32, i32) {
    %c0_i32 = arith.constant 0 : i32
    %c0_i32_0 = arith.constant 0 : i32
    return %c0_i32, %arg1 : i32, i32
  }
  func.func @transform_3(%arg0: i32, %arg1: i32) -> (i32, i32) {
    %c0_i32 = arith.constant 0 : i32
    %c0_i32_0 = arith.constant 0 : i32
    return %c0_i32, %arg1 : i32, i32
  }
  func.func @transform_4(%arg0: i32, %arg1: i32) -> (i32, i32) {
    %c0_i32 = arith.constant 0 : i32
    return %arg0, %arg1 : i32, i32
  }
}

</mosaic_0001>

<llo_original>
// kernel: tpu_custom_call.1
$region0: #{tpu_custom_call.1}
  #allocation0 [shape = 'u32[]', space=smem, size = 0x4, offset = 0x4, fixed_abs, tag = 'smem constant byte address 0x4 - core index']
  #allocation1 [shape = 'u32[72,128]{1,0:T(1,128)}', space=vmem, size = 0x9000, scoped, tag = 'internal scratch']
  #allocation2 [shape = 'f32[8,128]{1,0:T(8,128)}', space=vmem, size = 0x1000, scoped, tag = 'scratch operand']
  %s0 = inlined_call_operand.hbm [shape: s32[8,8], index: 0, kind: input, shape index: {}]
  %s1 = inlined_call_operand.hbm [shape: bf16[256,128], index: 1, kind: input, shape index: {}]
  %s2 = inlined_call_operand.hbm [shape: bf16[128,256], index: 2, kind: input, shape index: {}]
  %s3 = inlined_call_operand.vmem [shape: f32[1,256], index: 3, kind: input, shape index: {}]
  %s4 = inlined_call_operand.hbm [shape: f32[8,256], index: 4, kind: output, shape index: {}]
  %s5 = sld [smem:[#allocation0]]
  $region42: #{tpu_custom_call.1} parent=0
    _
  %s7 = ssub.s32 1, %s5
  %s8 = scalar_select 0, %s7, %s5
  $region1: #{tpu_custom_call.1} parent=0
    #allocation3 [shape = 'u8[4096]{0}', space=vmem, size = 0x1000, scoped, tag = 'input window, operand 0, single buffered']
    #allocation4 [shape = 's32[1]{0}', space=sflag, size = 0x4, scoped, tag = 'scoped memory for tpu_custom_call.1']
    #allocation5 [shape = 's32[1]{0}', space=sflag, size = 0x4, scoped, tag = 'scoped memory for tpu_custom_call.1']
    #allocation6 [shape = 'u8[65536]{0}', space=vmem, size = 0x10000, scoped, tag = 'input window, operand 1, single buffered']
    #allocation7 [shape = 's32[1]{0}', space=sflag, size = 0x4, scoped, tag = 'scoped memory for tpu_custom_call.1']
    #allocation8 [shape = 'u8[65536]{0}', space=vmem, size = 0x10000, scoped, tag = 'input window, operand 2, single buffered']
    #allocation9 [shape = 'u8[8192]{0}', space=vmem, size = 0x2000, scoped, tag = 'output window, operand 0, single buffered']
    %9 = vsyncpa [#allocation4], 0
    %10 = vsyncpa [#allocation7], 0
    %11 = vsyncpa [#allocation5], 0
    // Predicated region
    $region2: #{tpu_custom_call.1} parent=1 // pred_check
      _
    $region3: #{tpu_custom_call.1} parent=1 // pred_check_branch
      %13 = sbr.rel (0) target = $region5
    $region4: #{tpu_custom_call.1} parent=1 // pred_region
      %15 = vsyncadd [#allocation4], 0
      %s17 = sshll.u32 %s0, 4
      %s18 = int_to_ptr.hbm [resolvable:$true] %s17
      %s19 = sshll.u32 [#allocation3], 4
      %s20 = int_to_ptr.vmem [resolvable:$true] %s19
      %22 = dma.hbm_to_vmem [thread:$0]  %s18, 128, %s20, [#allocation4]
    $region5: #{tpu_custom_call.1} parent=1 // pred_fallthru
      _
    // Predicated region
    $region6: #{tpu_custom_call.1} parent=1 // pred_check
      _
    $region7: #{tpu_custom_call.1} parent=1 // pred_check_branch
      %24 = sbr.rel (0) target = $region9
    $region8: #{tpu_custom_call.1} parent=1 // pred_region
      %26 = vsyncadd [#allocation7], 0
      %s27 = sshll.u32 %s1, 4
      %s28 = int_to_ptr.hbm [resolvable:$true] %s27
      %s29 = sshll.u32 [#allocation6], 4
      %s30 = int_to_ptr.vmem [resolvable:$true] %s29
      %35 = dma.hbm_to_vmem [thread:$0]  %s28, 2048, %s30, [#allocation7], 64, 64, 4
    $region9: #{tpu_custom_call.1} parent=1 // pred_fallthru
      _
    // Predicated region
    $region10: #{tpu_custom_call.1} parent=1 // pred_check
      _
    $region11: #{tpu_custom_call.1} parent=1 // pred_check_branch
      %37 = sbr.rel (0) target = $region13
    $region12: #{tpu_custom_call.1} parent=1 // pred_region
      %39 = vsyncadd [#allocation7], 0
      %s40 = sshll.u32 %s2, 4
      %s41 = int_to_ptr.hbm [resolvable:$true] %s40
      %s42 = sshll.u32 [#allocation8], 4
      %s43 = int_to_ptr.vmem [resolvable:$true] %s42
      %48 = dma.hbm_to_vmem [thread:$0]  %s41, 2048, %s43, [#allocation7], 128, 128, 8
    $region13: #{tpu_custom_call.1} parent=1 // pred_fallthru
      _
    // Predicated region
    $region14: #{tpu_custom_call.1} parent=1 // pred_check
      _
    $region15: #{tpu_custom_call.1} parent=1 // pred_check_branch
      %50 = sbr.rel (0) target = $region17
    $region16: #{tpu_custom_call.1} parent=1 // pred_region
      _
    $region17: #{tpu_custom_call.1} parent=1 // pred_fallthru
      _
    // Predicated region
    $region18: #{tpu_custom_call.1} parent=1 // pred_check
      _
    $region19: #{tpu_custom_call.1} parent=1 // pred_check_branch
      %52 = sbr.rel (0) target = $region21
    $region20: #{tpu_custom_call.1} parent=1 // pred_region
      %54 = dma.done [#allocation4], 128
    $region21: #{tpu_custom_call.1} parent=1 // pred_fallthru
      _
    // Predicated region
    $region22: #{tpu_custom_call.1} parent=1 // pred_check
      _
    $region23: #{tpu_custom_call.1} parent=1 // pred_check_branch
      %56 = sbr.rel (0) target = $region25
    $region24: #{tpu_custom_call.1} parent=1 // pred_region
      %58 = dma.done [#allocation7], 2048
    $region25: #{tpu_custom_call.1} parent=1 // pred_fallthru
      _
    // Predicated region
    $region26: #{tpu_custom_call.1} parent=1 // pred_check
      _
    $region27: #{tpu_custom_call.1} parent=1 // pred_check_branch
      %60 = sbr.rel (0) target = $region29
    $region28: #{tpu_custom_call.1} parent=1 // pred_region
      %62 = dma.done [#allocation7], 2048
    $region29: #{tpu_custom_call.1} parent=1 // pred_fallthru
      _
    %p63 = scmp.eq.s32.totalorder 0, 0
    // Predicated region
    $region30: #{tpu_custom_call.1} parent=1 // pred_check
      %p64 = pneg %p63
    $region31: #{tpu_custom_call.1} parent=1 // pred_check_branch
      %66 = sbr.rel (%p64) target = $region33
    $region32: #{tpu_custom_call.1} parent=1 // pred_region
      %v67 = vld [vmem:[#allocation3] sm:$0xff]
      %v68 = vlaneseq
      %v69 = vand.u32 %v68, 127
      %v70 = vadd.s32 %v69, 128
      %71 = vset.pattern.permute.xlu0 0
      %72 = vperm.xlu0 %71, %v67
      %v73 = vpop.permute.xlu0 %72
      %vm74 = vcmp.eq.s32.totalorder %v69, %v73
      %vm75 = vcmp.eq.s32.totalorder %v70, %v73
      %v76 = vsel %vm74, 1, 0
      %v77 = vsel %vm75, 1, 0
      %v78 = vcvt.s32.f32 %v76
      %v79 = vcvt.s32.f32 %v77
      %v80 = vadd.f32 %v78, 0.0
      %v81 = vadd.f32 %v79, 0.0
      %82 = vset.pattern.permute.xlu0 1
      %83 = vperm.xlu0 %82, %v67
      %v84 = vpop.permute.xlu0 %83
      %vm85 = vcmp.eq.s32.totalorder %v69, %v84
      %vm86 = vcmp.eq.s32.totalorder %v70, %v84
      %v87 = vsel %vm85, 1, 0
      %v88 = vsel %vm86, 1, 0
      %v89 = vcvt.s32.f32 %v87
      %v90 = vcvt.s32.f32 %v88
      %v91 = vadd.f32 %v89, 0.0
      %v92 = vadd.f32 %v90, 0.0
      %93 = vset.pattern.permute.xlu0 2
      %94 = vperm.xlu0 %93, %v67
      %v95 = vpop.permute.xlu0 %94
      %vm96 = vcmp.eq.s32.totalorder %v69, %v95
      %vm97 = vcmp.eq.s32.totalorder %v70, %v95
      %v98 = vsel %vm96, 1, 0
      %v99 = vsel %vm97, 1, 0
      %v100 = vcvt.s32.f32 %v98
      %v101 = vcvt.s32.f32 %v99
      %v102 = vadd.f32 %v80, %v100
      %v103 = vadd.f32 %v81, %v101
      %104 = vset.pattern.permute.xlu0 3
      %105 = vperm.xlu0 %104, %v67
      %v106 = vpop.permute.xlu0 %105
      %vm107 = vcmp.eq.s32.totalorder %v69, %v106
      %vm108 = vcmp.eq.s32.totalorder %v70, %v106
      %v109 = vsel %vm107, 1, 0
      %v110 = vsel %vm108, 1, 0
      %v111 = vcvt.s32.f32 %v109
      %v112 = vcvt.s32.f32 %v110
      %v113 = vadd.f32 %v91, %v111
      %v114 = vadd.f32 %v92, %v112
      %115 = vset.pattern.permute.xlu0 4
      %116 = vperm.xlu0 %115, %v67
      %v117 = vpop.permute.xlu0 %116
      %vm118 = vcmp.eq.s32.totalorder %v69, %v117
      %vm119 = vcmp.eq.s32.totalorder %v70, %v117
      %v120 = vsel %vm118, 1, 0
      %v121 = vsel %vm119, 1, 0
      %v122 = vcvt.s32.f32 %v120
      %v123 = vcvt.s32.f32 %v121
      %v124 = vadd.f32 %v102, %v122
      %v125 = vadd.f32 %v103, %v123
      %126 = vset.pattern.permute.xlu0 5
      %127 = vperm.xlu0 %126, %v67
      %v128 = vpop.permute.xlu0 %127
      %vm129 = vcmp.eq.s32.totalorder %v69, %v128
      %vm130 = vcmp.eq.s32.totalorder %v70, %v128
      %v131 = vsel %vm129, 1, 0
      %v132 = vsel %vm130, 1, 0
      %v133 = vcvt.s32.f32 %v131
      %v134 = vcvt.s32.f32 %v132
      %v135 = vadd.f32 %v113, %v133
      %v136 = vadd.f32 %v114, %v134
      %137 = vset.pattern.permute.xlu0 6
      %138 = vperm.xlu0 %137, %v67
      %v139 = vpop.permute.xlu0 %138
      %vm140 = vcmp.eq.s32.totalorder %v69, %v139
      %vm141 = vcmp.eq.s32.totalorder %v70, %v139
      %v142 = vsel %vm140, 1, 0
      %v143 = vsel %vm141, 1, 0
      %v144 = vcvt.s32.f32 %v142
      %v145 = vcvt.s32.f32 %v143
      %v146 = vadd.f32 %v124, %v144
      %v147 = vadd.f32 %v125, %v145
      %148 = vset.pattern.permute.xlu0 7
      %149 = vperm.xlu0 %148, %v67
      %v150 = vpop.permute.xlu0 %149
      %vm151 = vcmp.eq.s32.totalorder %v69, %v150
      %vm152 = vcmp.eq.s32.totalorder %v70, %v150
      %v153 = vsel %vm151, 1, 0
      %v154 = vsel %vm152, 1, 0
      %v155 = vcvt.s32.f32 %v153
      %v156 = vcvt.s32.f32 %v154
      %v157 = vadd.f32 %v135, %v155
      %v158 = vadd.f32 %v136, %v156
      %v159 = vadd.f32 %v146, %v157
      %v160 = vadd.f32 %v147, %v158
      %v161 = vpack.c.bf16 %v159, %v159
      %v162 = vpack.c.bf16 %v160, %v160
      %v163 = vld [vmem:[#allocation6] sm:$0xf]
      %v164 = vld [vmem:[#allocation6 + $0x4] sm:$0xf]
      %v165 = vld [vmem:[#allocation6 + $0x8] sm:$0xf]
      %v166 = vld [vmem:[#allocation6 + $0xc] sm:$0xf]
      %v167 = vld [vmem:[#allocation6 + $0x10] sm:$0xf]
      %v168 = vld [vmem:[#allocation6 + $0x14] sm:$0xf]
      %v169 = vld [vmem:[#allocation6 + $0x18] sm:$0xf]
      %v170 = vld [vmem:[#allocation6 + $0x1c] sm:$0xf]
      %v171 = vld [vmem:[#allocation6 + $0x20] sm:$0xf]
      %v172 = vld [vmem:[#allocation6 + $0x24] sm:$0xf]
      %v173 = vld [vmem:[#allocation6 + $0x28] sm:$0xf]
      %v174 = vld [vmem:[#allocation6 + $0x2c] sm:$0xf]
      %v175 = vld [vmem:[#allocation6 + $0x30] sm:$0xf]
      %v176 = vld [vmem:[#allocation6 + $0x34] sm:$0xf]
      %v177 = vld [vmem:[#allocation6 + $0x38] sm:$0xf]
      %v178 = vld [vmem:[#allocation6 + $0x3c] sm:$0xf]
      %v179 = vld [vmem:[#allocation6 + $0x40] sm:$0xf]
      %v180 = vld [vmem:[#allocation6 + $0x44] sm:$0xf]
      %v181 = vld [vmem:[#allocation6 + $0x48] sm:$0xf]
      %v182 = vld [vmem:[#allocation6 + $0x4c] sm:$0xf]
      %v183 = vld [vmem:[#allocation6 + $0x50] sm:$0xf]
      %v184 = vld [vmem:[#allocation6 + $0x54] sm:$0xf]
      %v185 = vld [vmem:[#allocation6 + $0x58] sm:$0xf]
      %v186 = vld [vmem:[#allocation6 + $0x5c] sm:$0xf]
      %v187 = vld [vmem:[#allocation6 + $0x60] sm:$0xf]
      %v188 = vld [vmem:[#allocation6 + $0x64] sm:$0xf]
      %v189 = vld [vmem:[#allocation6 + $0x68] sm:$0xf]
      %v190 = vld [vmem:[#allocation6 + $0x6c] sm:$0xf]
      %v191 = vld [vmem:[#allocation6 + $0x70] sm:$0xf]
      %v192 = vld [vmem:[#allocation6 + $0x74] sm:$0xf]
      %v193 = vld [vmem:[#allocation6 + $0x78] sm:$0xf]
      %v194 = vld [vmem:[#allocation6 + $0x7c] sm:$0xf]
      %v227 = vunpack.c.l.b16 %v163
      %v228 = vunpack.c.l.b16 %v164
      %v229 = vunpack.c.l.b16 %v165
      %v230 = vunpack.c.l.b16 %v166
      %v231 = vunpack.c.l.b16 %v167
      %v232 = vunpack.c.l.b16 %v168
      %v233 = vunpack.c.l.b16 %v169
      %v234 = vunpack.c.l.b16 %v170
      %v235 = vunpack.c.l.b16 %v171
      %v236 = vunpack.c.l.b16 %v172
      %v237 = vunpack.c.l.b16 %v173
      %v238 = vunpack.c.l.b16 %v174
      %v239 = vunpack.c.l.b16 %v175
      %v240 = vunpack.c.l.b16 %v176
      %v241 = vunpack.c.l.b16 %v177
      %v242 = vunpack.c.l.b16 %v178
      %v243 = vunpack.c.l.b16 %v179
      %v244 = vunpack.c.l.b16 %v180
      %v245 = vunpack.c.l.b16 %v181
      %v246 = vunpack.c.l.b16 %v182
      %v247 = vunpack.c.l.b16 %v183
      %v248 = vunpack.c.l.b16 %v184
      %v249 = vunpack.c.l.b16 %v185
      %v250 = vunpack.c.l.b16 %v186
      %v251 = vunpack.c.l.b16 %v187
      %v252 = vunpack.c.l.b16 %v188
      %v253 = vunpack.c.l.b16 %v189
      %v254 = vunpack.c.l.b16 %v190
      %v255 = vunpack.c.l.b16 %v191
      %v256 = vunpack.c.l.b16 %v192
      %v257 = vunpack.c.l.b16 %v193
      %v258 = vunpack.c.l.b16 %v194
      %v259 = vpack.c.b16 %v228, %v227
      %v260 = vpack.c.b16 %v230, %v229
      %v261 = vpack.c.b16 %v232, %v231
      %v262 = vpack.c.b16 %v234, %v233
      %v263 = vpack.c.b16 %v236, %v235
      %v264 = vpack.c.b16 %v238, %v237
      %v265 = vpack.c.b16 %v240, %v239
      %v266 = vpack.c.b16 %v242, %v241
      %v267 = vpack.c.b16 %v244, %v243
      %v268 = vpack.c.b16 %v246, %v245
      %v269 = vpack.c.b16 %v248, %v247
      %v270 = vpack.c.b16 %v250, %v249
      %v271 = vpack.c.b16 %v252, %v251
      %v272 = vpack.c.b16 %v254, %v253
      %v273 = vpack.c.b16 %v256, %v255
      %v274 = vpack.c.b16 %v258, %v257
      %291 = vmatpush.bf16.msra.mxu0 %v266
      %292 = vmatpush.bf16.msra.mxu0 %v265
      %293 = vmatpush.bf16.msra.mxu0 %v264
      %294 = vmatpush.bf16.msra.mxu0 %v263
      %295 = vmatpush.bf16.msra.mxu0 %v262
      %296 = vmatpush.bf16.msra.mxu0 %v261
      %297 = vmatpush.bf16.msra.mxu0 %v260
      %298 = vmatpush.bf16.msra.mxu0 %v259
      %299 = vmatmul.bf16.gmra.mxu0 %v161
      %v300 = vpop.f32.mrf.mxu0
      %v301 = vadd.f32 0.0, %v300
      %v302 = vpop.f32.mrf.mxu0
      %303 = vdwg.mxu0
      %304 = vmatpush.bf16.msra.mxu0 %v274
      %305 = vmatpush.bf16.msra.mxu0 %v273
      %306 = vmatpush.bf16.msra.mxu0 %v272
      %307 = vmatpush.bf16.msra.mxu0 %v271
      %308 = vmatpush.bf16.msra.mxu0 %v270
      %309 = vmatpush.bf16.msra.mxu0 %v269
      %310 = vmatpush.bf16.msra.mxu0 %v268
      %311 = vmatpush.bf16.msra.mxu0 %v267
      %312 = vmatmul.bf16.gmra.mxu0 %v162
      %v313 = vpop.f32.mrf.mxu0
      %v314 = vadd.f32 %v301, %v313
      %v315 = vpop.f32.mrf.mxu0
      %316 = vdwg.mxu0
      %317 = vst [vmem:[#allocation2] sm:$0xff] %v314
    $region33: #{tpu_custom_call.1} parent=1 // pred_fallthru
      _
    %v318 = vld [vmem:[#allocation2] sm:$0xff]
    %v319 = vpack.c.bf16 %v318, %v318
    %v320 = vld [vmem:[#allocation8] sm:$0xff]
    %v321 = vld [vmem:[#allocation8 + $0x8] sm:$0xff]
    %v322 = vld [vmem:[#allocation8 + $0x10] sm:$0xff]
    %v323 = vld [vmem:[#allocation8 + $0x18] sm:$0xff]
    %v324 = vld [vmem:[#allocation8 + $0x20] sm:$0xff]
    %v325 = vld [vmem:[#allocation8 + $0x28] sm:$0xff]
    %v326 = vld [vmem:[#allocation8 + $0x30] sm:$0xff]
    %v327 = vld [vmem:[#allocation8 + $0x38] sm:$0xff]
    %v328 = vld [vmem:[#allocation8 + $0x40] sm:$0xff]
    %v329 = vld [vmem:[#allocation8 + $0x48] sm:$0xff]
    %v330 = vld [vmem:[#allocation8 + $0x50] sm:$0xff]
    %v331 = vld [vmem:[#allocation8 + $0x58] sm:$0xff]
    %v332 = vld [vmem:[#allocation8 + $0x60] sm:$0xff]
    %v333 = vld [vmem:[#allocation8 + $0x68] sm:$0xff]
    %v334 = vld [vmem:[#allocation8 + $0x70] sm:$0xff]
    %v335 = vld [vmem:[#allocation8 + $0x78] sm:$0xff]
    %v336 = vld [vmem:[%s3] sm:$0x3]
    %v338 = vperm.slane %v336, 0
    %v339 = vperm.slane %v336, 1
    %v358 = vunpack.c.l.b16 %v320
    %v359 = vunpack.c.h.b16 %v320
    %v360 = vunpack.c.l.b16 %v321
    %v361 = vunpack.c.h.b16 %v321
    %v362 = vunpack.c.l.b16 %v322
    %v363 = vunpack.c.h.b16 %v322
    %v364 = vunpack.c.l.b16 %v323
    %v365 = vunpack.c.h.b16 %v323
    %v366 = vunpack.c.l.b16 %v324
    %v367 = vunpack.c.h.b16 %v324
    %v368 = vunpack.c.l.b16 %v325
    %v369 = vunpack.c.h.b16 %v325
    %v370 = vunpack.c.l.b16 %v326
    %v371 = vunpack.c.h.b16 %v326
    %v372 = vunpack.c.l.b16 %v327
    %v373 = vunpack.c.h.b16 %v327
    %v374 = vunpack.c.l.b16 %v328
    %v375 = vunpack.c.h.b16 %v328
    %v376 = vunpack.c.l.b16 %v329
    %v377 = vunpack.c.h.b16 %v329
    %v378 = vunpack.c.l.b16 %v330
    %v379 = vunpack.c.h.b16 %v330
    %v380 = vunpack.c.l.b16 %v331
    %v381 = vunpack.c.h.b16 %v331
    %v382 = vunpack.c.l.b16 %v332
    %v383 = vunpack.c.h.b16 %v332
    %v384 = vunpack.c.l.b16 %v333
    %v385 = vunpack.c.h.b16 %v333
    %v386 = vunpack.c.l.b16 %v334
    %v387 = vunpack.c.h.b16 %v334
    %v388 = vunpack.c.l.b16 %v335
    %v389 = vunpack.c.h.b16 %v335
    %v390 = vpack.c.b16 %v360, %v358
    %v391 = vpack.c.b16 %v361, %v359
    %v392 = vpack.c.b16 %v364, %v362
    %v393 = vpack.c.b16 %v365, %v363
    %v394 = vpack.c.b16 %v368, %v366
    %v395 = vpack.c.b16 %v369, %v367
    %v396 = vpack.c.b16 %v372, %v370
    %v397 = vpack.c.b16 %v373, %v371
    %v398 = vpack.c.b16 %v376, %v374
    %v399 = vpack.c.b16 %v377, %v375
    %v400 = vpack.c.b16 %v380, %v378
    %v401 = vpack.c.b16 %v381, %v379
    %v402 = vpack.c.b16 %v384, %v382
    %v403 = vpack.c.b16 %v385, %v383
    %v404 = vpack.c.b16 %v388, %v386
    %v405 = vpack.c.b16 %v389, %v387
    %422 = vmatpush.bf16.msra.mxu0 %v404
    %423 = vmatpush.bf16.msra.mxu0 %v402
    %424 = vmatpush.bf16.msra.mxu0 %v400
    %425 = vmatpush.bf16.msra.mxu0 %v398
    %426 = vmatpush.bf16.msra.mxu0 %v396
    %427 = vmatpush.bf16.msra.mxu0 %v394
    %428 = vmatpush.bf16.msra.mxu0 %v392
    %429 = vmatpush.bf16.msra.mxu0 %v390
    %430 = vmatmul.bf16.gmra.mxu0 %v319
    %v431 = vpop.f32.mrf.mxu0
    %v432 = vadd.f32 %v338, %v431
    %v433 = vpop.f32.mrf.mxu0
    %434 = vdwg.mxu0
    %435 = vmatpush.bf16.msra.mxu0 %v405
    %436 = vmatpush.bf16.msra.mxu0 %v403
    %437 = vmatpush.bf16.msra.mxu0 %v401
    %438 = vmatpush.bf16.msra.mxu0 %v399
    %439 = vmatpush.bf16.msra.mxu0 %v397
    %440 = vmatpush.bf16.msra.mxu0 %v395
    %441 = vmatpush.bf16.msra.mxu0 %v393
    %442 = vmatpush.bf16.msra.mxu0 %v391
    %443 = vmatmul.bf16.gmra.mxu0 %v319
    %v444 = vpop.f32.mrf.mxu0
    %v445 = vadd.f32 %v339, %v444
    %v446 = vpop.f32.mrf.mxu0
    %447 = vdwg.mxu0
    %448 = vst [vmem:[#allocation9] sm:$0xff] %v432
    %449 = vst [vmem:[#allocation9 + $0x8] sm:$0xff] %v445
    // Predicated region
    $region34: #{tpu_custom_call.1} parent=1 // pred_check
      _
    $region35: #{tpu_custom_call.1} parent=1 // pred_check_branch
      %451 = sbr.rel (0) target = $region37
    $region36: #{tpu_custom_call.1} parent=1 // pred_region
      %453 = vsyncadd [#allocation5], 0
      %s455 = sshll.u32 [#allocation9], 4
      %s456 = int_to_ptr.vmem [resolvable:$true] %s455
      %s457 = sshll.u32 %s4, 4
      %s458 = int_to_ptr.hbm [resolvable:$true] %s457
      %460 = dma.vmem_to_hbm [thread:$0]  %s456, 256, %s458, [#allocation5]
    $region37: #{tpu_custom_call.1} parent=1 // pred_fallthru
      _
    // Predicated region
    $region38: #{tpu_custom_call.1} parent=1 // pred_check
      _
    $region39: #{tpu_custom_call.1} parent=1 // pred_check_branch
      %462 = sbr.rel (0) target = $region41
    $region40: #{tpu_custom_call.1} parent=1 // pred_region
      %464 = dma.done [#allocation5], 256
    $region41: #{tpu_custom_call.1} parent=1 // pred_fallthru
      _
    %465 = vsyncpa [#allocation4], 1
    %466 = vsyncpa [#allocation7], 1
    %467 = vsyncpa [#allocation5], 1

</llo_original>
